<compile_context>
chip_gen: v5e
topology: v5e:2x2
jax: 0.10.0
libtpu: 0.0.40
codegen_flags: <defaults>
</compile_context>

<pallas_src>
import jax
import jax.numpy as jnp
from jax import lax
from jax.experimental import pallas as pl
from jax.experimental.pallas import tpu as pltpu

BN_EPS = 1e-5
_LANE = 128


# --------------------------------------------------------------------------
# Kernels
# --------------------------------------------------------------------------
def _stats_kernel(x_ref, sumx_ref, gram_ref):
    """Pass 1: per-batch partial sum(x) and Gram(x) = x @ x^T over the L axis.

    x_ref:    (C_in, tile_ls)       lane-dense x tile
    sumx_ref: (C_in, 1)             resident per-b accumulator
    gram_ref: (C_in, C_in)          resident per-b accumulator
    """
    @pl.when(pl.program_id(1) == 0)
    def _():
        sumx_ref[...] = jnp.zeros_like(sumx_ref)
        gram_ref[...] = jnp.zeros_like(gram_ref)

    x = x_ref[...]
    sumx_ref[...] += jnp.sum(x, axis=1, keepdims=True)
    # Contract the lane (L) axis of both operands: G += x @ x^T without
    # materializing a transposed copy of the tile.
    gram_ref[...] += lax.dot_general(
        x, x, (((1,), (1,)), ((), ())), preferred_element_type=jnp.float32)


def _apply_kernel(x_ref, wf_ref, bf_ref, o_ref):
    """Pass 2: out = relu(w_fold @ x + b_fold) on a lane-dense (C_out, tile_l) tile."""
    y = jnp.dot(wf_ref[...], x_ref[...], preferred_element_type=jnp.float32)
    o_ref[...] = jnp.maximum(y + bf_ref[...], 0.0).astype(o_ref.dtype)


# --------------------------------------------------------------------------
# Tiling / VMEM budget helpers
# --------------------------------------------------------------------------
def _vmem_limit_bytes():
    """Generation-aware scoped-VMEM target (half of physical, capped at 64 MiB)."""
    try:
        phys = int(pltpu.get_tpu_info().vmem_capacity_bytes)
    except Exception:
        phys = 64 * 1024 * 1024          # conservative: v7x has the smallest VMEM
    return min(phys // 2, 64 * 1024 * 1024)


def _pick_tile(L, bytes_per_lane, budget, cap):
    """Largest multiple of 128 that divides L, fits `budget` bytes, and is <= cap."""
    max_l = min(budget // max(bytes_per_lane, 1), cap, L)
    if max_l >= L:
        return L
    t = (max_l // _LANE) * _LANE
    while t >= _LANE:
        if L % t == 0:
            return t
        t -= _LANE
    return L          # no nice divisor: fall back to the full length


# --------------------------------------------------------------------------
# Wrapper
# --------------------------------------------------------------------------
def linear1_layer(x, w, gamma, beta, *, tile_l=None, out_dtype=None):
    """Fused Conv1d(k=1) + BatchNorm1d(training) + ReLU.

    x: (B, C_in, L) f32, w: (C_out, C_in) f32, gamma/beta: (C_out,) f32.
    Returns (B, C_out, L) in out_dtype (default: x.dtype; bf16 halves the
    dominant output HBM stream while keeping f32 accumulation in-kernel).
    A Conv1d bias cancels exactly under training-mode BatchNorm, so it is
    intentionally not an input.
    """
    B, C_in, L = x.shape
    C_out = w.shape[0]
    out_dtype = x.dtype if out_dtype is None else out_dtype

    vmem_limit = _vmem_limit_bytes()
    budget = int(vmem_limit * 0.85)      # headroom under the scoped limit

    if tile_l is None:
        # Apply pass: double-buffered x-in + out tiles (+ f32 accumulate).
        tl_apply = _pick_tile(L, 4 * 2 * (C_in + 2 * C_out), budget, 16384)
        # Stats pass only streams C_in rows of x: prefer the full L when it fits.
        tl_stats = _pick_tile(L, 4 * 2 * C_in, budget, 1 << 30)
    else:
        tl_apply = tile_l
        tl_stats = tile_l

    # ---- Pass 1: per-batch partial sum(x) / Gram(x), B "parallel", L "arbitrary" ----
    ns = max(L // tl_stats, 1)
    sumx_b, gram_b = pl.pallas_call(
        _stats_kernel,
        grid=(B, ns),
        in_specs=[pl.BlockSpec((None, C_in, tl_stats), lambda b, l: (b, 0, l))],
        out_specs=[pl.BlockSpec((None, C_in, 1), lambda b, l: (b, 0, 0)),
                   pl.BlockSpec((None, C_in, C_in), lambda b, l: (b, 0, 0))],
        out_shape=[jax.ShapeDtypeStruct((B, C_in, 1), jnp.float32),
                   jax.ShapeDtypeStruct((B, C_in, C_in), jnp.float32)],
        compiler_params=pltpu.CompilerParams(
            dimension_semantics=("parallel", "arbitrary"),
            vmem_limit_bytes=vmem_limit),
    )(x)

    # ---- Fold BN statistics into the matmul (tiny (C_in/C_out)-sized JAX ops) ----
    n = jnp.float32(B * L)
    sum_x = jnp.sum(sumx_b, axis=0)                      # (C_in, 1)
    gram = jnp.sum(gram_b, axis=0)                       # (C_in, C_in)
    mean = (w @ sum_x) / n                               # (C_out, 1)
    e_y2 = jnp.sum((w @ gram) * w, axis=1, keepdims=True) / n
    var = jnp.maximum(e_y2 - mean * mean, 0.0)           # clamp: f32 cancellation guard
    scale = gamma.reshape(C_out, 1) * lax.rsqrt(var + BN_EPS)
    w_fold = scale * w                                   # (C_out, C_in)
    b_fold = beta.reshape(C_out, 1) - scale * mean       # (C_out, 1)

    # ---- Pass 2: tiled matmul + affine + ReLU, native (B, C_out, L) layout ----
    na = max(L // tl_apply, 1)
    out = pl.pallas_call(
        _apply_kernel,
        grid=(B, na),
        in_specs=[pl.BlockSpec((None, C_in, tl_apply), lambda b, l: (b, 0, l)),
                  pl.BlockSpec((C_out, C_in), lambda b, l: (0, 0)),
                  pl.BlockSpec((C_out, 1), lambda b, l: (0, 0))],
        out_specs=pl.BlockSpec((None, C_out, tl_apply), lambda b, l: (b, 0, l)),
        out_shape=jax.ShapeDtypeStruct((B, C_out, L), out_dtype),
        compiler_params=pltpu.CompilerParams(
            dimension_semantics=("parallel", "parallel"),
            vmem_limit_bytes=vmem_limit),
    )(x, w_fold, b_fold)
    return out


# --------------------------------------------------------------------------
# Pure-JAX reference and self-check
# --------------------------------------------------------------------------
def reference(x, w, b, gamma, beta):
    """Pure-JAX reference of Conv1d(k=1, bias) + BatchNorm1d(train) + ReLU."""
    y = jnp.einsum("oc,bcl->bol", w, x) + b[None, :, None]
    mean = jnp.mean(y, axis=(0, 2), keepdims=True)
    var = jnp.mean((y - mean) ** 2, axis=(0, 2), keepdims=True)
    y_hat = (y - mean) / jnp.sqrt(var + BN_EPS)
    out = gamma[None, :, None] * y_hat + beta[None, :, None]
    return jnp.maximum(out, 0.0)


if __name__ == "__main__":
    B, C_in, C_out, L = 2, 4, 8, 256

    key = jax.random.PRNGKey(0)
    kx, kw, kb, kg, kbt = jax.random.split(key, 5)

    x = jax.random.normal(kx, (B, C_in, L), dtype=jnp.float32)

    bound = 1.0 / (C_in ** 0.5)
    w = jax.random.uniform(kw, (C_out, C_in), minval=-bound, maxval=bound,
                           dtype=jnp.float32)
    b = jax.random.uniform(kb, (C_out,), minval=-bound, maxval=bound,
                           dtype=jnp.float32)
    gamma = jax.random.uniform(kg, (C_out,), minval=0.5, maxval=1.5,
                               dtype=jnp.float32)
    beta = 0.1 * jax.random.normal(kbt, (C_out,), dtype=jnp.float32)

    # Reference includes the Conv1d bias; the kernel drops it because it
    # cancels exactly under training-mode BatchNorm — results must still match.
    ref = jax.block_until_ready(reference(x, w, b, gamma, beta))

    # Forced small tile: exercises the multi-tile (2x2) grid and the per-b
    # L-accumulation path of the stats pass.
    out_small = jax.block_until_ready(linear1_layer(x, w, gamma, beta, tile_l=128))
    # Auto (VMEM-budget) tiles: the production path (full-L blocks here).
    out_auto = jax.block_until_ready(linear1_layer(x, w, gamma, beta))

    assert out_small.shape == (B, C_out, L)
    assert out_auto.shape == (B, C_out, L)
    for out in (out_small, out_auto):
        err = float(jnp.max(jnp.abs(out.astype(jnp.float32) - ref)))
        assert jnp.allclose(out.astype(jnp.float32), ref, atol=1e-4, rtol=1e-4), err
    print("KERNEL_OK")
</pallas_src>

<mosaic_0001>
module attributes {stable_mosaic.version = 11 : i64} {
  func.func @_stats_kernel(%arg0: i32, %arg1: i32, %arg2: memref<1x4x128xf32, #tpu.memory_space<vmem>>, %arg3: memref<1x4x1xf32, #tpu.memory_space<vmem>>, %arg4: memref<1x4x4xf32, #tpu.memory_space<vmem>>) attributes {dimension_semantics = [#tpu.dimension_semantics<parallel>, #tpu.dimension_semantics<arbitrary>], iteration_bounds = array<i64: 2, 2>, scalar_prefetch = 0 : i64, scratch_operands = 0 : i64, tpu.core_type = #tpu.core_type<tc>, window_params = [{transform_indices = @transform_0, window_bounds = array<i64: 1, 4, 128>}, {transform_indices = @transform_1, window_bounds = array<i64: 1, 4, 1>}, {transform_indices = @transform_2, window_bounds = array<i64: 1, 4, 4>}]} {
    %c0_i32 = arith.constant 0 : i32
    %0 = arith.cmpi eq, %arg1, %c0_i32 : i32
    %1 = arith.extui %0 : i1 to i32
    %c0_i32_0 = arith.constant 0 : i32
    %2 = arith.cmpi ne, %1, %c0_i32_0 : i32
    scf.if %2 {
      %cst_16 = arith.constant 0.000000e+00 : f32
      %20 = vector.broadcast %cst_16 : f32 to vector<4x1xf32>
      %c0_17 = arith.constant 0 : index
      %c0_18 = arith.constant 0 : index
      %c0_19 = arith.constant 0 : index
      %21 = vector.load %arg3[%c0_17, %c0_18, %c0_19] : memref<1x4x1xf32, #tpu.memory_space<vmem>>, vector<1x4x1xf32>
      %22 = vector.shape_cast %21 : vector<1x4x1xf32> to vector<4x1xf32>
      %23 = vector.shape_cast %20 : vector<4x1xf32> to vector<1x4x1xf32>
      tpu.vector_store %arg3[%c0_17, %c0_18, %c0_19], %23 {strides = array<i32>} : memref<1x4x1xf32, #tpu.memory_space<vmem>>, vector<1x4x1xf32>,
      %cst_20 = arith.constant 0.000000e+00 : f32
      %24 = vector.broadcast %cst_20 : f32 to vector<4x4xf32>
      %c0_21 = arith.constant 0 : index
      %c0_22 = arith.constant 0 : index
      %c0_23 = arith.constant 0 : index
      %25 = vector.load %arg4[%c0_21, %c0_22, %c0_23] : memref<1x4x4xf32, #tpu.memory_space<vmem>>, vector<1x4x4xf32>
      %26 = vector.shape_cast %25 : vector<1x4x4xf32> to vector<4x4xf32>
      %27 = vector.shape_cast %24 : vector<4x4xf32> to vector<1x4x4xf32>
      tpu.vector_store %arg4[%c0_21, %c0_22, %c0_23], %27 {strides = array<i32>} : memref<1x4x4xf32, #tpu.memory_space<vmem>>, vector<1x4x4xf32>,
    } else {
    }
    %c0 = arith.constant 0 : index
    %c0_1 = arith.constant 0 : index
    %c0_2 = arith.constant 0 : index
    %3 = vector.load %arg2[%c0, %c0_1, %c0_2] : memref<1x4x128xf32, #tpu.memory_space<vmem>>, vector<1x4x128xf32>
    %4 = vector.shape_cast %3 : vector<1x4x128xf32> to vector<4x128xf32>
    %c0_3 = arith.constant 0 : index
    %c0_4 = arith.constant 0 : index
    %c0_5 = arith.constant 0 : index
    %5 = vector.load %arg3[%c0_3, %c0_4, %c0_5] : memref<1x4x1xf32, #tpu.memory_space<vmem>>, vector<1x4x1xf32>
    %6 = vector.shape_cast %5 : vector<1x4x1xf32> to vector<4x1xf32>
    %cst = arith.constant dense<0.000000e+00> : vector<4xf32>
    %7 = vector.multi_reduction <add>, %4, %cst [1] : vector<4x128xf32> to vector<4xf32>
    %8 = vector.shape_cast %7 : vector<4xf32> to vector<4x1xf32>
    %9 = arith.addf %6, %8 : vector<4x1xf32>
    %c0_6 = arith.constant 0 : index
    %c0_7 = arith.constant 0 : index
    %c0_8 = arith.constant 0 : index
    %10 = vector.load %arg3[%c0_6, %c0_7, %c0_8] : memref<1x4x1xf32, #tpu.memory_space<vmem>>, vector<1x4x1xf32>
    %11 = vector.shape_cast %10 : vector<1x4x1xf32> to vector<4x1xf32>
    %12 = vector.shape_cast %9 : vector<4x1xf32> to vector<1x4x1xf32>
    tpu.vector_store %arg3[%c0_6, %c0_7, %c0_8], %12 {strides = array<i32>} : memref<1x4x1xf32, #tpu.memory_space<vmem>>, vector<1x4x1xf32>,
    %c0_9 = arith.constant 0 : index
    %c0_10 = arith.constant 0 : index
    %c0_11 = arith.constant 0 : index
    %13 = vector.load %arg4[%c0_9, %c0_10, %c0_11] : memref<1x4x4xf32, #tpu.memory_space<vmem>>, vector<1x4x4xf32>
    %14 = vector.shape_cast %13 : vector<1x4x4xf32> to vector<4x4xf32>
    %cst_12 = arith.constant dense<0.000000e+00> : vector<4x4xf32>
    %15 = tpu.matmul %4, %4, %cst_12 {dimension_numbers = #tpu.dot_dimension_numbers<[1], [1], [0], [0], [0, 0, 1, 0], [], []>} : vector<4x128xf32>, vector<4x128xf32>, vector<4x4xf32> -> vector<4x4xf32>
    %16 = arith.addf %14, %15 : vector<4x4xf32>
    %c0_13 = arith.constant 0 : index
    %c0_14 = arith.constant 0 : index
    %c0_15 = arith.constant 0 : index
    %17 = vector.load %arg4[%c0_13, %c0_14, %c0_15] : memref<1x4x4xf32, #tpu.memory_space<vmem>>, vector<1x4x4xf32>
    %18 = vector.shape_cast %17 : vector<1x4x4xf32> to vector<4x4xf32>
    %19 = vector.shape_cast %16 : vector<4x4xf32> to vector<1x4x4xf32>
    tpu.vector_store %arg4[%c0_13, %c0_14, %c0_15], %19 {strides = array<i32>} : memref<1x4x4xf32, #tpu.memory_space<vmem>>, vector<1x4x4xf32>,
    return
  }
  func.func @transform_0(%arg0: i32, %arg1: i32) -> (i32, i32, i32) {
    %c0_i32 = arith.constant 0 : i32
    %c0_i32_0 = arith.constant 0 : i32
    return %arg0, %c0_i32, %arg1 : i32, i32, i32
  }
  func.func @transform_1(%arg0: i32, %arg1: i32) -> (i32, i32, i32) {
    %c0_i32 = arith.constant 0 : i32
    %c0_i32_0 = arith.constant 0 : i32
    %c0_i32_1 = arith.constant 0 : i32
    return %arg0, %c0_i32, %c0_i32_0 : i32, i32, i32
  }
  func.func @transform_2(%arg0: i32, %arg1: i32) -> (i32, i32, i32) {
    %c0_i32 = arith.constant 0 : i32
    %c0_i32_0 = arith.constant 0 : i32
    %c0_i32_1 = arith.constant 0 : i32
    return %arg0, %c0_i32, %c0_i32_0 : i32, i32, i32
  }
}

</mosaic_0001>

<llo_original>
// kernel: tpu_custom_call.1
$region0: #{tpu_custom_call.1}
  #allocation0 [shape = 'u32[]', space=smem, size = 0x4, offset = 0x4, fixed_abs, tag = 'smem constant byte address 0x4 - core index']
  #allocation1 [shape = 'u32[72,128]{1,0:T(1,128)}', space=vmem, size = 0x9000, scoped, tag = 'internal scratch']
  %s0 = inlined_call_operand.hbm [shape: f32[2,4,256], index: 0, kind: input, shape index: {}]
  %s1 = inlined_call_operand.vmem [shape: f32[2,4,1], index: 1, kind: output, shape index: {0}]
  %s2 = inlined_call_operand.hbm [shape: f32[2,4,4], index: 2, kind: output, shape index: {1}]
  %3 = xla_tuple %s1, %s2
  %s4 = sld [smem:[#allocation0]]
  $region53: #{tpu_custom_call.1} parent=0
    _
  %s6 = ssub.s32 1, %s4
  %s7 = scalar_select 0, %s6, %s4
  $region1: #{tpu_custom_call.1} parent=0
    #allocation2 [shape = 'u8[4096]{0}', space=vmem, size = 0x1000, scoped, tag = 'input window, operand 0']
    #allocation3 [shape = 's32[2]{0}', space=sflag, size = 0x8, scoped, tag = 'scoped memory for tpu_custom_call.1']
    #allocation4 [shape = 's32[2]{0}', space=sflag, size = 0x8, scoped, tag = 'scoped memory for tpu_custom_call.1']
    #allocation5 [shape = 'u8[4096]{0}', space=vmem, size = 0x1000, scoped, tag = 'output window, operand 1']
    %8 = vsyncpa [#allocation3], 0
    %s9 = scalar_lea.sflag [#allocation3], 1
    %10 = vsyncpa %s9, 0
    %11 = vsyncpa [#allocation4], 0
    %s12 = scalar_lea.sflag [#allocation4], 1
    %13 = vsyncpa %s12, 0
    loop: start=0, step=1, limit=6
    $region2: #{tpu_custom_call.1} parent=1 // loop_pre_header
      _
    $region3: #{tpu_custom_call.1} parent=1 // loop_header
      %s15 = sphi 0, %s19
      %p16 = scmp.ge.s32.totalorder %s15, 6
      %s22 = sphi 0, %s34
      %s23 = sphi 0, %s30
      %s24 = sphi 0, %s22
      %s25 = sphi 0, %s23
      %s26 = sphi 0, %s24
      %s27 = sphi 0, %s25
      %s39 = sphi 0, %s41
      %s42 = sphi 0, %s39
      %s43 = sphi 0, %s42
      %s59 = sphi 0, %s43
      %s65 = sphi 0, %s67
      %s68 = sphi 0, %s65
      %s69 = sphi 0, %s68
      %s85 = sphi 0, %s69
      %s91 = sphi 0, %s93
      %s94 = sphi 0, %s91
      %s95 = sphi 0, %s94
      %s111 = sphi 0, %s95
    $region4: #{tpu_custom_call.1} parent=1 // loop_header_branch
      %18 = sbr.rel (%p16) target = $region8
    $region5: #{tpu_custom_call.1} parent=1 // loop_body
      %s20 = ssub.s32 %s15, 1
      %s21 = ssub.s32 %s15, 2
      %s28 = sadd.s32 1, %s23
      %p29 = scmp.ge.s32.totalorder %s28, 2
      %s30 = scalar_select %p29, 0, %s28
      %s31 = sadd.s32 1, %s22
      %s32 = scalar_select %p29, %s31, %s22
      %p33 = scmp.ge.s32.totalorder %s32, 2
      %s34 = scalar_select %p33, 0, %s32
      %s35 = ssub.s32 %s22, %s34
      %s36 = ssub.s32 %s23, %s30
      %s37 = sor.u32 %s35, %s36
      %p38 = scmp.eq.s32.totalorder %s37, 0
      %s40 = sadd.s32 %s39, 1
      %s41 = scalar_select %p38, %s39, %s40
      %p44 = pneg %p38
      %p45 = scmp.eq.s32.totalorder %s15, 3
      %p46 = por %p44, %p45
      %p47 = scmp.ne.s32.totalorder %s39, %s42
      %p48 = scmp.eq.s32.totalorder %s15, 0
      %p49 = por %p47, %p48
      %p50 = scmp.ne.s32.totalorder %s39, %s42
      %p51 = scmp.eq.s32.totalorder %s20, 3
      %p52 = por %p50, %p51
      %p53 = scmp.ne.s32.totalorder %s42, %s43
      %p54 = scmp.eq.s32.totalorder %s20, 0
      %p55 = por %p53, %p54
      %p56 = scmp.ne.s32.totalorder %s42, %s43
      %p57 = scmp.eq.s32.totalorder %s21, 3
      %p58 = por %p56, %p57
      %p60 = scmp.ne.s32.totalorder %s43, %s59
      %p61 = scmp.eq.s32.totalorder %s21, 0
      %p62 = por %p60, %p61
      %s63 = ssub.s32 %s22, %s34
      %p64 = scmp.eq.s32.totalorder %s63, 0
      %s66 = sadd.s32 %s65, 1
      %s67 = scalar_select %p64, %s65, %s66
      %p70 = pneg %p64
      %p71 = scmp.eq.s32.totalorder %s15, 3
      %p72 = por %p70, %p71
      %p73 = scmp.ne.s32.totalorder %s65, %s68
      %p74 = scmp.eq.s32.totalorder %s15, 0
      %p75 = por %p73, %p74
      %p76 = scmp.ne.s32.totalorder %s65, %s68
      %p77 = scmp.eq.s32.totalorder %s20, 3
      %p78 = por %p76, %p77
      %p79 = scmp.ne.s32.totalorder %s68, %s69
      %p80 = scmp.eq.s32.totalorder %s20, 0
      %p81 = por %p79, %p80
      %p82 = scmp.ne.s32.totalorder %s68, %s69
      %p83 = scmp.eq.s32.totalorder %s21, 3
      %p84 = por %p82, %p83
      %p86 = scmp.ne.s32.totalorder %s69, %s85
      %p87 = scmp.eq.s32.totalorder %s21, 0
      %p88 = por %p86, %p87
      %s89 = ssub.s32 %s22, %s34
      %p90 = scmp.eq.s32.totalorder %s89, 0
      %s92 = sadd.s32 %s91, 1
      %s93 = scalar_select %p90, %s91, %s92
      %p96 = pneg %p90
      %p97 = scmp.eq.s32.totalorder %s15, 3
      %p98 = por %p96, %p97
      %p99 = scmp.ne.s32.totalorder %s91, %s94
      %p100 = scmp.eq.s32.totalorder %s15, 0
      %p101 = por %p99, %p100
      %p102 = scmp.ne.s32.totalorder %s91, %s94
      %p103 = scmp.eq.s32.totalorder %s20, 3
      %p104 = por %p102, %p103
      %p105 = scmp.ne.s32.totalorder %s94, %s95
      %p106 = scmp.eq.s32.totalorder %s20, 0
      %p107 = por %p105, %p106
      %p108 = scmp.ne.s32.totalorder %s94, %s95
      %p109 = scmp.eq.s32.totalorder %s21, 3
      %p110 = por %p108, %p109
      %p112 = scmp.ne.s32.totalorder %s95, %s111
      %p113 = scmp.eq.s32.totalorder %s21, 0
      %p114 = por %p112, %p113
      %p115 = scmp.le.s32.totalorder 1, %s15
      %p116 = scmp.lt.s32.totalorder %s15, 5
      %p117 = pnand %p115, %p116
      %p118 = pneg %p117
      // Predicated region
      $region9: #{tpu_custom_call.1} parent=5 // pred_check
        _
      $region10: #{tpu_custom_call.1} parent=5 // pred_check_branch
        %120 = sbr.rel (%p117) target = $region12
      $region11: #{tpu_custom_call.1} parent=5 // pred_region
        %s121 = ssub.s32 %s15, 1
      $region12: #{tpu_custom_call.1} parent=5 // pred_fallthru
        _
      %p122 = scmp.lt.s32.totalorder %s15, 4
      // Predicated region
      $region13: #{tpu_custom_call.1} parent=5 // pred_check
        %p123 = pneg %p122
      $region14: #{tpu_custom_call.1} parent=5 // pred_check_branch
        %125 = sbr.rel (%p123) target = $region16
      $region15: #{tpu_custom_call.1} parent=5 // pred_region
        // Predicated region
        $region17: #{tpu_custom_call.1} parent=15 // pred_check
          %p126 = pneg %p49
        $region18: #{tpu_custom_call.1} parent=15 // pred_check_branch
          %128 = sbr.rel (%p126) target = $region20
        $region19: #{tpu_custom_call.1} parent=15 // pred_region
          %s129 = sand.u32 %s39, 1
          %s130 = scalar_lea.sflag [#allocation3], %s129
          %s131 = sand.u32 %s39, 1
          %s132 = smul.addr %s131, 4
          %s133 = scalar_lea.vmem [#allocation2], %s132
          %135 = vsyncadd %s130, 0
          %s136 = smul.addr %s22, 2
          %s137 = sadd.s32 %s23, %s136
          %s138 = smul.addr %s137, 4
          %s139 = scalar_lea.hbm %s0, %s138
          %s141 = sshll.u32 %s139, 4
          %s142 = int_to_ptr.hbm [resolvable:$true] %s141
          %s143 = sshll.u32 %s133, 4
          %s144 = int_to_ptr.vmem [resolvable:$true] %s143
          %146 = dma.hbm_to_vmem [thread:$0]  %s142, 64, %s144, %s130
        $region20: #{tpu_custom_call.1} parent=15 // pred_fallthru
          _
      $region16: #{tpu_custom_call.1} parent=5 // pred_fallthru
        _
      %p147 = scmp.le.s32.totalorder 1, %s15
      %p148 = scmp.lt.s32.totalorder %s15, 5
      %p149 = pnand %p147, %p148
      %p150 = pneg %p149
      // Predicated region
      $region21: #{tpu_custom_call.1} parent=5 // pred_check
        _
      $region22: #{tpu_custom_call.1} parent=5 // pred_check_branch
        %152 = sbr.rel (%p149) target = $region24
      $region23: #{tpu_custom_call.1} parent=5 // pred_region
        %s153 = ssub.s32 %s15, 1
        %s154 = sand.u32 %s42, 1
        %s155 = scalar_lea.sflag [#allocation3], %s154
        %s156 = sand.u32 %s42, 1
        %s157 = smul.addr %s156, 4
        %s158 = scalar_lea.vmem [#allocation2], %s157
        // Predicated region
        $region25: #{tpu_custom_call.1} parent=23 // pred_check
          %p159 = pneg %p55
        $region26: #{tpu_custom_call.1} parent=23 // pred_check_branch
          %161 = sbr.rel (%p159) target = $region28
        $region27: #{tpu_custom_call.1} parent=23 // pred_region
          %163 = dma.done %s155, 64
        $region28: #{tpu_custom_call.1} parent=23 // pred_fallthru
          _
        %s164 = sand.u32 %s42, 1
        %s165 = scalar_lea.sflag [#allocation3], %s164
        %s166 = sand.u32 %s42, 1
        %s167 = smul.addr %s166, 4
        %s168 = scalar_lea.vmem [#allocation2], %s167
        %p169 = pneg %p55
        %p170 = pneg %p52
        %p171 = pneg %p81
        %p172 = pneg %p78
        %p173 = scmp.lt.s32.totalorder %s24, 1
        %s174 = scalar_select %p173, %s24, 1
        %s175 = smul.addr %s174, 4
        %s176 = scalar_lea.vmem %s1, %s175
        %p177 = pneg %p107
        %p178 = pneg %p104
        %s179 = sand.u32 %s94, 1
        %s180 = scalar_lea.sflag [#allocation4], %s179
        %s181 = sand.u32 %s94, 1
        %s182 = smul.addr %s181, 4
        %s183 = scalar_lea.vmem [#allocation5], %s182
        %p184 = scmp.lt.s32.totalorder %s24, 1
        %s185 = scalar_select %p184, %s24, 1
        %s186 = smul.addr %s185, 4
        %s187 = scalar_lea.vmem %s1, %s186
        %p188 = scmp.eq.s32.totalorder %s25, 0
        // Predicated region
        $region29: #{tpu_custom_call.1} parent=23 // pred_check
          %p189 = pneg %p188
        $region30: #{tpu_custom_call.1} parent=23 // pred_check_branch
          %191 = sbr.rel (%p189) target = $region32
        $region31: #{tpu_custom_call.1} parent=23 // pred_region
          %vm192 = vcmask 3072
          %193 = vst.msk [vmem:[%s187] sm:$0xf] %vm192, 0.0
          %vm194 = vcmask 27648
          %195 = vst.msk [vmem:[%s183] sm:$0xf] %vm194, 0.0
        $region32: #{tpu_custom_call.1} parent=23 // pred_fallthru
          _
        %v196 = vld [vmem:[%s158] sm:$0xf]
        %v197 = vld [vmem:[%s187] sm:$0xf]
        %vm198 = vcmask 1043456
        %v199 = vsel %vm198, %v196, 0.0
        %200 = vadd.xlane.f32.xlu0 %v199
        %v201 = vpop.xlane.xlu0 %200
        %v202 = vadd.f32 %v197, %v201
        %vm203 = vcmask 3072
        %204 = vst.msk [vmem:[%s187] sm:$0xf] %vm203, %v202
        %v205 = vld [vmem:[%s183] sm:$0xf]
        %206 = vmatpush.xpose.msra.mxu0 0.0
        %207 = vmatpush.xpose.msra.mxu0 0.0
        %208 = vmatpush.xpose.msra.mxu0 0.0
        %209 = vmatpush.xpose.msra.mxu0 0.0
        %210 = vmatpush.xpose.msra.mxu0 0.0
        %211 = vmatpush.xpose.msra.mxu0 0.0
        %212 = vmatpush.xpose.msra.mxu0 0.0
        %213 = vmatpush.xpose.msra.mxu0 0.0
        %214 = vmatpush.xpose.msra.mxu0 0.0
        %215 = vmatpush.xpose.msra.mxu0 0.0
        %216 = vmatpush.xpose.msra.mxu0 0.0
        %217 = vmatpush.xpose.msra.mxu0 0.0
        %218 = vmatpush.xpose.msra.mxu0 0.0
        %219 = vmatpush.xpose.msra.mxu0 0.0
        %220 = vmatpush.xpose.msra.mxu0 0.0
        %221 = vmatpush.xpose.msra.mxu0 %v196
        %222 = vmatmul.f32.gmra.mxu0 %v196
        %v223 = vpop.f32.mrf.mxu0
        %v224 = vadd.f32 0.0, %v223
        %225 = vdwg.mxu0
        %v226 = vadd.f32 %v205, %v224
        %vm227 = vcmask 27648
        %228 = vst.msk [vmem:[%s183] sm:$0xf] %vm227, %v226
        %p229 = scmp.lt.s32.totalorder %s24, 1
        %s230 = scalar_select %p229, %s24, 1
        %s231 = smul.addr %s230, 4
        %s232 = scalar_lea.vmem %s1, %s231
        %s233 = sand.u32 %s94, 1
        %s234 = scalar_lea.sflag [#allocation4], %s233
        %s235 = sand.u32 %s94, 1
        %s236 = smul.addr %s235, 4
        %s237 = scalar_lea.vmem [#allocation5], %s236
        // Predicated region
        $region33: #{tpu_custom_call.1} parent=23 // pred_check
          %p238 = pneg %p78
        $region34: #{tpu_custom_call.1} parent=23 // pred_check_branch
          %240 = sbr.rel (%p238) target = $region36
        $region35: #{tpu_custom_call.1} parent=23 // pred_region
          _
        $region36: #{tpu_custom_call.1} parent=23 // pred_fallthru
          _
        // Predicated region
        $region37: #{tpu_custom_call.1} parent=23 // pred_check
          %p241 = pneg %p104
        $region38: #{tpu_custom_call.1} parent=23 // pred_check_branch
          %243 = sbr.rel (%p241) target = $region40
        $region39: #{tpu_custom_call.1} parent=23 // pred_region
          %245 = vsyncadd %s234, 0
          %s246 = smul.addr %s24, 4
          %s247 = scalar_lea.hbm %s2, %s246
          %s249 = sshll.u32 %s237, 4
          %s250 = int_to_ptr.vmem [resolvable:$true] %s249
          %s251 = sshll.u32 %s247, 4
          %s252 = int_to_ptr.hbm [resolvable:$true] %s251
          %254 = dma.vmem_to_hbm [thread:$0]  %s250, 64, %s252, %s234
        $region40: #{tpu_custom_call.1} parent=23 // pred_fallthru
          _
      $region24: #{tpu_custom_call.1} parent=5 // pred_fallthru
        _
      %p255 = scmp.le.s32.totalorder 2, %s15
      // Predicated region
      $region41: #{tpu_custom_call.1} parent=5 // pred_check
        %p256 = pneg %p255
      $region42: #{tpu_custom_call.1} parent=5 // pred_check_branch
        %258 = sbr.rel (%p256) target = $region44
      $region43: #{tpu_custom_call.1} parent=5 // pred_region
        %s259 = ssub.s32 %s15, 2
        // Predicated region
        $region45: #{tpu_custom_call.1} parent=43 // pred_check
          %p260 = pneg %p84
        $region46: #{tpu_custom_call.1} parent=43 // pred_check_branch
          %262 = sbr.rel (%p260) target = $region48
        $region47: #{tpu_custom_call.1} parent=43 // pred_region
          %p263 = scmp.lt.s32.totalorder %s26, 1
          %s264 = scalar_select %p263, %s26, 1
          %s265 = smul.addr %s264, 4
          %s266 = scalar_lea.vmem %s1, %s265
        $region48: #{tpu_custom_call.1} parent=43 // pred_fallthru
          _
        // Predicated region
        $region49: #{tpu_custom_call.1} parent=43 // pred_check
          %p267 = pneg %p110
        $region50: #{tpu_custom_call.1} parent=43 // pred_check_branch
          %269 = sbr.rel (%p267) target = $region52
        $region51: #{tpu_custom_call.1} parent=43 // pred_region
          %s270 = sand.u32 %s95, 1
          %s271 = scalar_lea.sflag [#allocation4], %s270
          %s272 = sand.u32 %s95, 1
          %s273 = smul.addr %s272, 4
          %s274 = scalar_lea.vmem [#allocation5], %s273
          %276 = dma.done %s271, 64
        $region52: #{tpu_custom_call.1} parent=43 // pred_fallthru
          _
      $region44: #{tpu_custom_call.1} parent=5 // pred_fallthru
        _
    $region6: #{tpu_custom_call.1} parent=1 // loop_footer
      %s19 = sadd.s32 1, %s15
    $region7: #{tpu_custom_call.1} parent=1 // loop_footer_branch
      %14 = sbr.rel target = $region3
    $region8: #{tpu_custom_call.1} parent=1 // loop_exit
      _
    %277 = vsyncpa [#allocation3], 1
    %s278 = scalar_lea.sflag [#allocation3], 1
    %279 = vsyncpa %s278, 1
    %280 = vsyncpa [#allocation4], 1
    %s281 = scalar_lea.sflag [#allocation4], 1
    %282 = vsyncpa %s281, 1

</llo_original>
